<compile_context>
chip_gen: v6e
topology: v6e:2x2x1
jax: 0.10.0
libtpu: 0.0.40
codegen_flags: <defaults>
</compile_context>

<pallas_src>
import jax
import jax.numpy as jnp
from jax import lax
from jax.experimental import pallas as pl
from jax.experimental.pallas import tpu as pltpu

NUM_CATEGORIES = 26
TILE_N = 8192                    # rows per grid step (f32: 4 MiB/buffer after 26->128 lane pad)
_NUM_CORES = 2                   # leading "parallel" grid axis; uses both TCs on v7x
_VMEM_LIMIT_BYTES = 32 * 1024 * 1024

_STATIC_WEIGHTS = jnp.array(
    [[0.1435, 0.187, 0.1692, 0.1165, 0.1949, 0.1204, 0.1728, 0.1372, 0.162,
      0.154, 0.1987, 0.1057, 0.1482, 0.1192, 0.159, 0.1929, 0.1158, 0.1907,
      0.1345, 0.1307, 0.1665, 0.1698, 0.1797, 0.1657, 0.152, 0.1537]],
    dtype=jnp.float32,
)


# ----------------------------------------------------------------------------
# Kernel
# ----------------------------------------------------------------------------
def _make_kernel(track_stats: bool, n_rows: int, tile_n: int, blocks_per_core: int):
    """Streaming per-category reduction kernel.

    Output block (per core, squeezed): (out_rows, 26) f32
      row 0: sum over rows of (pred - target)^2      (per category)
      row 1: sum over rows of target (dynamic only)  (per category)
    """
    out_rows = 2 if track_stats else 1

    def kernel(pred_ref, target_ref, out_ref):
        c = pl.program_id(0)           # batch-half index ("parallel": core on v7x)
        i = pl.program_id(1)           # reduction step within the half ("arbitrary")

        @pl.when(i == 0)
        def _init():
            out_ref[...] = jnp.zeros((out_rows, NUM_CATEGORIES), jnp.float32)

        # Valid rows of the *logical* (unclamped) block; <= 0 for the duplicated
        # block a core sees when the total block count is odd.
        rem = n_rows - (c * blocks_per_core + i) * tile_n

        p = pred_ref[...].astype(jnp.float32)
        t = target_ref[...].astype(jnp.float32)

        def _accumulate(pv, tv):
            d = pv - tv
            out_ref[0:1, :] += jnp.sum(d * d, axis=0, keepdims=True)
            if track_stats:
                out_ref[1:2, :] += jnp.sum(tv, axis=0, keepdims=True)

        @pl.when(rem >= tile_n)        # interior block: no masking work
        def _full():
            _accumulate(p, t)

        @pl.when(rem < tile_n)         # boundary / duplicated block: mask rows >= n
        def _tail():
            row = lax.broadcasted_iota(jnp.int32, (tile_n, NUM_CATEGORIES), 0)
            valid = row < rem
            _accumulate(jnp.where(valid, p, 0.0), jnp.where(valid, t, 0.0))

    return kernel


# ----------------------------------------------------------------------------
# Wrapper
# ----------------------------------------------------------------------------
class DiscreteLoss:
    """JAX/Pallas port of the PyTorch DiscreteLoss module."""

    def __init__(self, weight_type: str = "mean", tile_rows: int | None = None):
        self.weight_type = weight_type
        self.tile_rows = tile_rows   # override for tests; defaults to TILE_N
        if weight_type == "mean":
            self.weights = jnp.ones((1, NUM_CATEGORIES), jnp.float32) / NUM_CATEGORIES
        elif weight_type == "static":
            self.weights = _STATIC_WEIGHTS
        elif weight_type == "dynamic":
            self.weights = None
        else:
            raise ValueError(f"unknown weight_type: {weight_type}")

    def __call__(self, pred: jax.Array, target: jax.Array) -> jax.Array:
        assert pred.shape == target.shape and pred.ndim == 2
        assert pred.shape[-1] == NUM_CATEGORIES
        n = pred.shape[0]
        if n == 0:
            return jnp.zeros((), jnp.float32)

        # Tile size: a multiple of 8 when the batch is tiled, or the full batch
        # as a single block (always a legal block shape).  No padding of inputs.
        tile = self.tile_rows if self.tile_rows is not None else TILE_N
        if tile >= n:
            tile = n
        else:
            tile = max(8, (tile // 8) * 8)
            if tile >= n:
                tile = n

        total_blocks = pl.cdiv(n, tile)
        blocks_per_core = pl.cdiv(total_blocks, _NUM_CORES)
        last_block = total_blocks - 1

        track_stats = self.weight_type == "dynamic"
        out_rows = 2 if track_stats else 1

        def row_index(c, i):
            # Clamp so the DMA never starts past the end of the array; the
            # duplicated logical block (odd block count) contributes zero
            # because the kernel masks by the *unclamped* block position.
            return (jnp.minimum(c * blocks_per_core + i, last_block), 0)

        row_spec = pl.BlockSpec((tile, NUM_CATEGORIES), row_index)
        out_spec = pl.BlockSpec((None, out_rows, NUM_CATEGORIES), lambda c, i: (c, 0, 0))

        partials = pl.pallas_call(
            _make_kernel(track_stats, n, tile, blocks_per_core),
            out_shape=jax.ShapeDtypeStruct(
                (_NUM_CORES, out_rows, NUM_CATEGORIES), jnp.float32),
            grid_spec=pltpu.PrefetchScalarGridSpec(
                num_scalar_prefetch=0,
                grid=(_NUM_CORES, blocks_per_core),
                in_specs=[row_spec, row_spec],
                out_specs=out_spec,
            ),
            compiler_params=pltpu.CompilerParams(
                dimension_semantics=("parallel", "arbitrary"),
                vmem_limit_bytes=_VMEM_LIMIT_BYTES,
            ),
        )(pred, target)

        # O(26) finishing work: combine the two core partials and apply weights.
        acc = jnp.sum(partials, axis=0)          # (out_rows, 26)
        sse = acc[0]                             # per-category sum of squared diffs
        if self.weight_type == "mean":
            return jnp.sum(sse) * jnp.float32(1.0 / NUM_CATEGORIES)
        if self.weight_type == "static":
            return jnp.sum(sse * self.weights[0])
        stats = acc[1]
        w = jnp.where(stats != 0.0, 1.0 / jnp.log(stats + 1.2), jnp.float32(1e-4))
        return jnp.sum(w * sse)


# ----------------------------------------------------------------------------
# Pure-JAX reference for verification
# ----------------------------------------------------------------------------
def _reference(pred, target, weight_type, weights):
    pred = pred.astype(jnp.float32)
    target = target.astype(jnp.float32)
    if weight_type == "dynamic":
        stats = jnp.sum(target, axis=0, keepdims=True)
        weights = jnp.where(stats != 0.0, 1.0 / jnp.log(stats + 1.2), 1e-4)
    return jnp.sum((pred - target) ** 2 * weights)


if __name__ == "__main__":
    key = jax.random.PRNGKey(0)
    k1, k2, k3, k4 = jax.random.split(key, 4)

    # Case A: small batch, deliberately not a multiple of 8 (single-block path).
    pred_a = jax.random.normal(k1, (10, NUM_CATEGORIES), jnp.float32)
    target_a = (jax.random.uniform(k2, (10, NUM_CATEGORIES)) > 0.7).astype(jnp.float32)

    # Case B: tile_rows=8 over 30 rows -> multi-block accumulation, masked tail
    # block, and both "cores" of the parallel axis doing real work.
    pred_b = jax.random.normal(k3, (30, NUM_CATEGORIES), jnp.float32)
    target_b = (jax.random.uniform(k4, (30, NUM_CATEGORIES)) > 0.7).astype(jnp.float32)

    ok = True
    for wt in ("mean", "static", "dynamic"):
        for (p, t, tile_rows) in ((pred_a, target_a, None), (pred_b, target_b, 8)):
            loss_mod = DiscreteLoss(weight_type=wt, tile_rows=tile_rows)
            out = loss_mod(p, t)
            jax.block_until_ready(out)
            ref = _reference(p, t, wt, loss_mod.weights)
            if not jnp.allclose(out, ref, rtol=1e-5, atol=1e-4):
                ok = False
                print(f"MISMATCH [{wt}, tile_rows={tile_rows}]: kernel={out}, ref={ref}")

    if ok:
        print("KERNEL_OK")
</pallas_src>

<mosaic_0001>
module attributes {stable_mosaic.version = 11 : i64} {
  func.func @kernel(%arg0: i32, %arg1: i32, %arg2: memref<10x26xf32, #tpu.memory_space<vmem>>, %arg3: memref<10x26xf32, #tpu.memory_space<vmem>>, %arg4: memref<1x1x26xf32, #tpu.memory_space<vmem>>) attributes {dimension_semantics = [#tpu.dimension_semantics<parallel>, #tpu.dimension_semantics<arbitrary>], iteration_bounds = array<i64: 2, 1>, scalar_prefetch = 0 : i64, scratch_operands = 0 : i64, tpu.core_type = #tpu.core_type<tc>, window_params = [{transform_indices = @transform_0, window_bounds = array<i64: 10, 26>}, {transform_indices = @transform_1, window_bounds = array<i64: 10, 26>}, {transform_indices = @transform_2, window_bounds = array<i64: 1, 1, 26>}]} {
    %c0_i32 = arith.constant 0 : i32
    %0 = arith.cmpi eq, %arg1, %c0_i32 : i32
    %1 = arith.extui %0 : i1 to i32
    %c0_i32_0 = arith.constant 0 : i32
    %2 = arith.cmpi ne, %1, %c0_i32_0 : i32
    scf.if %2 {
      %cst = arith.constant 0.000000e+00 : f32
      %15 = vector.broadcast %cst : f32 to vector<1x26xf32>
      %c0_9 = arith.constant 0 : index
      %c0_10 = arith.constant 0 : index
      %c0_11 = arith.constant 0 : index
      %16 = vector.load %arg4[%c0_9, %c0_10, %c0_11] : memref<1x1x26xf32, #tpu.memory_space<vmem>>, vector<1x1x26xf32>
      %17 = vector.shape_cast %16 : vector<1x1x26xf32> to vector<1x26xf32>
      %18 = vector.shape_cast %15 : vector<1x26xf32> to vector<1x1x26xf32>
      tpu.vector_store %arg4[%c0_9, %c0_10, %c0_11], %18 {strides = array<i32>} : memref<1x1x26xf32, #tpu.memory_space<vmem>>, vector<1x1x26xf32>,
    } else {
    }
    %c1_i32 = arith.constant 1 : i32
    %3 = arith.muli %arg0, %c1_i32 : i32
    %4 = arith.addi %3, %arg1 : i32
    %c10_i32 = arith.constant 10 : i32
    %5 = arith.muli %4, %c10_i32 : i32
    %c10_i32_1 = arith.constant 10 : i32
    %6 = arith.subi %c10_i32_1, %5 : i32
    %c0 = arith.constant 0 : index
    %c0_2 = arith.constant 0 : index
    %7 = vector.load %arg2[%c0, %c0_2] : memref<10x26xf32, #tpu.memory_space<vmem>>, vector<10x26xf32>
    %c0_3 = arith.constant 0 : index
    %c0_4 = arith.constant 0 : index
    %8 = vector.load %arg3[%c0_3, %c0_4] : memref<10x26xf32, #tpu.memory_space<vmem>>, vector<10x26xf32>
    %c10_i32_5 = arith.constant 10 : i32
    %9 = arith.cmpi sge, %6, %c10_i32_5 : i32
    %10 = arith.extui %9 : i1 to i32
    %c0_i32_6 = arith.constant 0 : i32
    %11 = arith.cmpi ne, %10, %c0_i32_6 : i32
    scf.if %11 {
      %15 = arith.subf %7, %8 : vector<10x26xf32>
      %c0_9 = arith.constant 0 : index
      %c0_10 = arith.constant 0 : index
      %c0_11 = arith.constant 0 : index
      %16 = vector.load %arg4[%c0_9, %c0_10, %c0_11] : memref<1x1x26xf32, #tpu.memory_space<vmem>>, vector<1x1x26xf32>
      %17 = vector.shape_cast %16 : vector<1x1x26xf32> to vector<1x26xf32>
      %18 = arith.mulf %15, %15 : vector<10x26xf32>
      %cst = arith.constant dense<0.000000e+00> : vector<26xf32>
      %19 = vector.multi_reduction <add>, %18, %cst [0] : vector<10x26xf32> to vector<26xf32>
      %20 = vector.shape_cast %19 : vector<26xf32> to vector<1x26xf32>
      %21 = arith.addf %17, %20 : vector<1x26xf32>
      %c0_12 = arith.constant 0 : index
      %c0_13 = arith.constant 0 : index
      %c0_14 = arith.constant 0 : index
      %22 = vector.load %arg4[%c0_12, %c0_13, %c0_14] : memref<1x1x26xf32, #tpu.memory_space<vmem>>, vector<1x1x26xf32>
      %23 = vector.shape_cast %22 : vector<1x1x26xf32> to vector<1x26xf32>
      %24 = vector.shape_cast %21 : vector<1x26xf32> to vector<1x1x26xf32>
      tpu.vector_store %arg4[%c0_12, %c0_13, %c0_14], %24 {strides = array<i32>} : memref<1x1x26xf32, #tpu.memory_space<vmem>>, vector<1x1x26xf32>,
    } else {
    }
    %c10_i32_7 = arith.constant 10 : i32
    %12 = arith.cmpi slt, %6, %c10_i32_7 : i32
    %13 = arith.extui %12 : i1 to i32
    %c0_i32_8 = arith.constant 0 : i32
    %14 = arith.cmpi ne, %13, %c0_i32_8 : i32
    scf.if %14 {
      %15 = tpu.iota {dimensions = array<i32: 0>} : vector<10x26xi32>
      %16 = vector.broadcast %6 : i32 to vector<10x26xi32>
      %17 = arith.cmpi slt, %15, %16 : vector<10x26xi32>
      %cst = arith.constant 0.000000e+00 : f32
      %18 = vector.broadcast %cst : f32 to vector<10x26xf32>
      %19 = arith.select %17, %7, %18 : vector<10x26xi1>, vector<10x26xf32>
      %cst_9 = arith.constant 0.000000e+00 : f32
      %20 = vector.broadcast %cst_9 : f32 to vector<10x26xf32>
      %21 = arith.select %17, %8, %20 : vector<10x26xi1>, vector<10x26xf32>
      %22 = arith.subf %19, %21 : vector<10x26xf32>
      %c0_10 = arith.constant 0 : index
      %c0_11 = arith.constant 0 : index
      %c0_12 = arith.constant 0 : index
      %23 = vector.load %arg4[%c0_10, %c0_11, %c0_12] : memref<1x1x26xf32, #tpu.memory_space<vmem>>, vector<1x1x26xf32>
      %24 = vector.shape_cast %23 : vector<1x1x26xf32> to vector<1x26xf32>
      %25 = arith.mulf %22, %22 : vector<10x26xf32>
      %cst_13 = arith.constant dense<0.000000e+00> : vector<26xf32>
      %26 = vector.multi_reduction <add>, %25, %cst_13 [0] : vector<10x26xf32> to vector<26xf32>
      %27 = vector.shape_cast %26 : vector<26xf32> to vector<1x26xf32>
      %28 = arith.addf %24, %27 : vector<1x26xf32>
      %c0_14 = arith.constant 0 : index
      %c0_15 = arith.constant 0 : index
      %c0_16 = arith.constant 0 : index
      %29 = vector.load %arg4[%c0_14, %c0_15, %c0_16] : memref<1x1x26xf32, #tpu.memory_space<vmem>>, vector<1x1x26xf32>
      %30 = vector.shape_cast %29 : vector<1x1x26xf32> to vector<1x26xf32>
      %31 = vector.shape_cast %28 : vector<1x26xf32> to vector<1x1x26xf32>
      tpu.vector_store %arg4[%c0_14, %c0_15, %c0_16], %31 {strides = array<i32>} : memref<1x1x26xf32, #tpu.memory_space<vmem>>, vector<1x1x26xf32>,
    } else {
    }
    return
  }
  func.func @transform_0(%arg0: i32, %arg1: i32) -> (i32, i32) {
    %c1_i32 = arith.constant 1 : i32
    %0 = arith.muli %arg0, %c1_i32 : i32
    %1 = arith.addi %0, %arg1 : i32
    %c0_i32 = arith.constant 0 : i32
    %2 = arith.minsi %1, %c0_i32 : i32
    %c0_i32_0 = arith.constant 0 : i32
    %c0_i32_1 = arith.constant 0 : i32
    return %2, %c0_i32_0 : i32, i32
  }
  func.func @transform_1(%arg0: i32, %arg1: i32) -> (i32, i32) {
    %c1_i32 = arith.constant 1 : i32
    %0 = arith.muli %arg0, %c1_i32 : i32
    %1 = arith.addi %0, %arg1 : i32
    %c0_i32 = arith.constant 0 : i32
    %2 = arith.minsi %1, %c0_i32 : i32
    %c0_i32_0 = arith.constant 0 : i32
    %c0_i32_1 = arith.constant 0 : i32
    return %2, %c0_i32_0 : i32, i32
  }
  func.func @transform_2(%arg0: i32, %arg1: i32) -> (i32, i32, i32) {
    %c0_i32 = arith.constant 0 : i32
    %c0_i32_0 = arith.constant 0 : i32
    %c0_i32_1 = arith.constant 0 : i32
    return %arg0, %c0_i32, %c0_i32_0 : i32, i32, i32
  }
}

</mosaic_0001>

<llo_original>
// kernel: tpu_custom_call.1
$region0: #{tpu_custom_call.1}
  #allocation0 [shape = 'u32[]', space=smem, size = 0x4, offset = 0x4, fixed_abs, tag = 'smem constant byte address 0x4 - core index']
  #allocation1 [shape = 'u32[144,128]{1,0:T(1,128)}', space=vmem, size = 0x12000, scoped, tag = 'internal scratch']
  %s0 = inlined_call_operand.hbm [shape: f32[10,26], index: 0, kind: input, shape index: {}]
  %s1 = inlined_call_operand.hbm [shape: f32[10,26], index: 1, kind: input, shape index: {}]
  %s2 = inlined_call_operand.hbm [shape: f32[2,1,26], index: 2, kind: output, shape index: {}]
  %s3 = sld [smem:[#allocation0]]
  $region61: #{tpu_custom_call.1} parent=0
    _
  %s5 = ssub.s32 1, %s3
  %s6 = scalar_select 0, %s5, %s3
  $region1: #{tpu_custom_call.1} parent=0
    #allocation2 [shape = 'u8[16384]{0}', space=vmem, size = 0x4000, scoped, tag = 'input window, operand 0']
    #allocation3 [shape = 's32[2]{0}', space=sflag, size = 0x8, scoped, tag = 'scoped memory for tpu_custom_call.1']
    #allocation4 [shape = 's32[2]{0}', space=sflag, size = 0x8, scoped, tag = 'scoped memory for tpu_custom_call.1']
    #allocation5 [shape = 'u8[16384]{0}', space=vmem, size = 0x4000, scoped, tag = 'input window, operand 1']
    #allocation6 [shape = 's32[2]{0}', space=sflag, size = 0x8, scoped, tag = 'scoped memory for tpu_custom_call.1']
    #allocation7 [shape = 'u8[1024]{0}', space=vmem, size = 0x400, scoped, tag = 'output window, operand 0']
    %7 = vsyncpa [#allocation3], 0
    %s8 = scalar_lea.sflag [#allocation3], 1
    %9 = vsyncpa %s8, 0
    %10 = vsyncpa [#allocation6], 0
    %s11 = scalar_lea.sflag [#allocation6], 1
    %12 = vsyncpa %s11, 0
    %13 = vsyncpa [#allocation4], 0
    %s14 = scalar_lea.sflag [#allocation4], 1
    %15 = vsyncpa %s14, 0
    loop: start=0, step=1, limit=4
    $region2: #{tpu_custom_call.1} parent=1 // loop_pre_header
      _
    $region3: #{tpu_custom_call.1} parent=1 // loop_header
      %s17 = sphi 0, %s21
      %p18 = scmp.ge.s32.totalorder %s17, 4
      %s24 = sphi 0, %s36
      %s25 = sphi 0, %s32
      %s26 = sphi 0, %s24
      %s27 = sphi 0, %s25
      %s28 = sphi 0, %s26
      %s29 = sphi 0, %s27
      %s45 = sphi 0, %s47
      %s48 = sphi 0, %s45
      %s49 = sphi 0, %s48
      %s65 = sphi 0, %s49
      %s77 = sphi 0, %s79
      %s80 = sphi 0, %s77
      %s81 = sphi 0, %s80
      %s97 = sphi 0, %s81
      %s103 = sphi 0, %s105
      %s106 = sphi 0, %s103
      %s107 = sphi 0, %s106
      %s123 = sphi 0, %s107
    $region4: #{tpu_custom_call.1} parent=1 // loop_header_branch
      %20 = sbr.rel (%p18) target = $region8
    $region5: #{tpu_custom_call.1} parent=1 // loop_body
      %s22 = ssub.s32 %s17, 1
      %s23 = ssub.s32 %s17, 2
      %s30 = sadd.s32 1, %s25
      %p31 = scmp.ge.s32.totalorder %s30, 1
      %s32 = scalar_select %p31, 0, %s30
      %s33 = sadd.s32 1, %s24
      %s34 = scalar_select %p31, %s33, %s24
      %p35 = scmp.ge.s32.totalorder %s34, 2
      %s36 = scalar_select %p35, 0, %s34
      %s37 = sadd.s32 %s24, %s25
      %p38 = scmp.lt.s32.totalorder %s37, 0
      %s39 = scalar_select %p38, %s37, 0
      %s40 = sadd.s32 %s36, %s32
      %p41 = scmp.lt.s32.totalorder %s40, 0
      %s42 = scalar_select %p41, %s40, 0
      %s43 = ssub.s32 %s39, %s42
      %p44 = scmp.eq.s32.totalorder %s43, 0
      %s46 = sadd.s32 %s45, 1
      %s47 = scalar_select %p44, %s45, %s46
      %p50 = pneg %p44
      %p51 = scmp.eq.s32.totalorder %s17, 1
      %p52 = por %p50, %p51
      %p53 = scmp.ne.s32.totalorder %s45, %s48
      %p54 = scmp.eq.s32.totalorder %s17, 0
      %p55 = por %p53, %p54
      %p56 = scmp.ne.s32.totalorder %s45, %s48
      %p57 = scmp.eq.s32.totalorder %s22, 1
      %p58 = por %p56, %p57
      %p59 = scmp.ne.s32.totalorder %s48, %s49
      %p60 = scmp.eq.s32.totalorder %s22, 0
      %p61 = por %p59, %p60
      %p62 = scmp.ne.s32.totalorder %s48, %s49
      %p63 = scmp.eq.s32.totalorder %s23, 1
      %p64 = por %p62, %p63
      %p66 = scmp.ne.s32.totalorder %s49, %s65
      %p67 = scmp.eq.s32.totalorder %s23, 0
      %p68 = por %p66, %p67
      %s69 = sadd.s32 %s24, %s25
      %p70 = scmp.lt.s32.totalorder %s69, 0
      %s71 = scalar_select %p70, %s69, 0
      %s72 = sadd.s32 %s36, %s32
      %p73 = scmp.lt.s32.totalorder %s72, 0
      %s74 = scalar_select %p73, %s72, 0
      %s75 = ssub.s32 %s71, %s74
      %p76 = scmp.eq.s32.totalorder %s75, 0
      %s78 = sadd.s32 %s77, 1
      %s79 = scalar_select %p76, %s77, %s78
      %p82 = pneg %p76
      %p83 = scmp.eq.s32.totalorder %s17, 1
      %p84 = por %p82, %p83
      %p85 = scmp.ne.s32.totalorder %s77, %s80
      %p86 = scmp.eq.s32.totalorder %s17, 0
      %p87 = por %p85, %p86
      %p88 = scmp.ne.s32.totalorder %s77, %s80
      %p89 = scmp.eq.s32.totalorder %s22, 1
      %p90 = por %p88, %p89
      %p91 = scmp.ne.s32.totalorder %s80, %s81
      %p92 = scmp.eq.s32.totalorder %s22, 0
      %p93 = por %p91, %p92
      %p94 = scmp.ne.s32.totalorder %s80, %s81
      %p95 = scmp.eq.s32.totalorder %s23, 1
      %p96 = por %p94, %p95
      %p98 = scmp.ne.s32.totalorder %s81, %s97
      %p99 = scmp.eq.s32.totalorder %s23, 0
      %p100 = por %p98, %p99
      %s101 = ssub.s32 %s24, %s36
      %p102 = scmp.eq.s32.totalorder %s101, 0
      %s104 = sadd.s32 %s103, 1
      %s105 = scalar_select %p102, %s103, %s104
      %p108 = pneg %p102
      %p109 = scmp.eq.s32.totalorder %s17, 1
      %p110 = por %p108, %p109
      %p111 = scmp.ne.s32.totalorder %s103, %s106
      %p112 = scmp.eq.s32.totalorder %s17, 0
      %p113 = por %p111, %p112
      %p114 = scmp.ne.s32.totalorder %s103, %s106
      %p115 = scmp.eq.s32.totalorder %s22, 1
      %p116 = por %p114, %p115
      %p117 = scmp.ne.s32.totalorder %s106, %s107
      %p118 = scmp.eq.s32.totalorder %s22, 0
      %p119 = por %p117, %p118
      %p120 = scmp.ne.s32.totalorder %s106, %s107
      %p121 = scmp.eq.s32.totalorder %s23, 1
      %p122 = por %p120, %p121
      %p124 = scmp.ne.s32.totalorder %s107, %s123
      %p125 = scmp.eq.s32.totalorder %s23, 0
      %p126 = por %p124, %p125
      %p127 = scmp.le.s32.totalorder 1, %s17
      %p128 = scmp.lt.s32.totalorder %s17, 3
      %p129 = pnand %p127, %p128
      %p130 = pneg %p129
      // Predicated region
      $region9: #{tpu_custom_call.1} parent=5 // pred_check
        _
      $region10: #{tpu_custom_call.1} parent=5 // pred_check_branch
        %132 = sbr.rel (%p129) target = $region12
      $region11: #{tpu_custom_call.1} parent=5 // pred_region
        %s133 = ssub.s32 %s17, 1
      $region12: #{tpu_custom_call.1} parent=5 // pred_fallthru
        _
      %p134 = scmp.lt.s32.totalorder %s17, 2
      // Predicated region
      $region13: #{tpu_custom_call.1} parent=5 // pred_check
        %p135 = pneg %p134
      $region14: #{tpu_custom_call.1} parent=5 // pred_check_branch
        %137 = sbr.rel (%p135) target = $region16
      $region15: #{tpu_custom_call.1} parent=5 // pred_region
        // Predicated region
        $region17: #{tpu_custom_call.1} parent=15 // pred_check
          %p138 = pneg %p55
        $region18: #{tpu_custom_call.1} parent=15 // pred_check_branch
          %140 = sbr.rel (%p138) target = $region20
        $region19: #{tpu_custom_call.1} parent=15 // pred_region
          %s141 = sand.u32 %s45, 1
          %s142 = scalar_lea.sflag [#allocation3], %s141
          %s143 = sand.u32 %s45, 1
          %s144 = smul.addr %s143, 16
          %s145 = scalar_lea.vmem [#allocation2], %s144
          %s146 = sadd.s32 %s24, %s25
          %p147 = scmp.lt.s32.totalorder %s146, 0
          %s148 = scalar_select %p147, %s146, 0
          %s149 = smul.u32 2, %s148
          %s151 = ssub.s32 256, 256
          %152 = vsyncadd %s142, %s151
          %s153 = smul.addr %s149, 128
          %s154 = scalar_lea.hbm %s0, %s153
          %s155 = sshll.u32 %s145, 4
          %s156 = int_to_ptr.vmem [resolvable:$true] %s155
          %161 = dma.hbm_to_vmem [thread:$0]  %s154, 256, %s156, %s142, 128, 128, 8
        $region20: #{tpu_custom_call.1} parent=15 // pred_fallthru
          _
        // Predicated region
        $region21: #{tpu_custom_call.1} parent=15 // pred_check
          %p162 = pneg %p87
        $region22: #{tpu_custom_call.1} parent=15 // pred_check_branch
          %164 = sbr.rel (%p162) target = $region24
        $region23: #{tpu_custom_call.1} parent=15 // pred_region
          %s165 = sand.u32 %s77, 1
          %s166 = scalar_lea.sflag [#allocation6], %s165
          %s167 = sand.u32 %s77, 1
          %s168 = smul.addr %s167, 16
          %s169 = scalar_lea.vmem [#allocation5], %s168
          %s170 = sadd.s32 %s24, %s25
          %p171 = scmp.lt.s32.totalorder %s170, 0
          %s172 = scalar_select %p171, %s170, 0
          %s173 = smul.u32 2, %s172
          %s175 = ssub.s32 256, 256
          %176 = vsyncadd %s166, %s175
          %s177 = smul.addr %s173, 128
          %s178 = scalar_lea.hbm %s1, %s177
          %s179 = sshll.u32 %s169, 4
          %s180 = int_to_ptr.vmem [resolvable:$true] %s179
          %185 = dma.hbm_to_vmem [thread:$0]  %s178, 256, %s180, %s166, 128, 128, 8
        $region24: #{tpu_custom_call.1} parent=15 // pred_fallthru
          _
      $region16: #{tpu_custom_call.1} parent=5 // pred_fallthru
        _
      %p186 = scmp.le.s32.totalorder 1, %s17
      %p187 = scmp.lt.s32.totalorder %s17, 3
      %p188 = pnand %p186, %p187
      %p189 = pneg %p188
      // Predicated region
      $region25: #{tpu_custom_call.1} parent=5 // pred_check
        _
      $region26: #{tpu_custom_call.1} parent=5 // pred_check_branch
        %191 = sbr.rel (%p188) target = $region28
      $region27: #{tpu_custom_call.1} parent=5 // pred_region
        %s192 = ssub.s32 %s17, 1
        %s193 = sand.u32 %s48, 1
        %s194 = scalar_lea.sflag [#allocation3], %s193
        %s195 = sand.u32 %s48, 1
        %s196 = smul.addr %s195, 16
        %s197 = scalar_lea.vmem [#allocation2], %s196
        // Predicated region
        $region29: #{tpu_custom_call.1} parent=27 // pred_check
          %p198 = pneg %p61
        $region30: #{tpu_custom_call.1} parent=27 // pred_check_branch
          %200 = sbr.rel (%p198) target = $region32
        $region31: #{tpu_custom_call.1} parent=27 // pred_region
          %201 = dma.done %s194, 256
        $region32: #{tpu_custom_call.1} parent=27 // pred_fallthru
          _
        %s202 = sand.u32 %s80, 1
        %s203 = scalar_lea.sflag [#allocation6], %s202
        %s204 = sand.u32 %s80, 1
        %s205 = smul.addr %s204, 16
        %s206 = scalar_lea.vmem [#allocation5], %s205
        // Predicated region
        $region33: #{tpu_custom_call.1} parent=27 // pred_check
          %p207 = pneg %p93
        $region34: #{tpu_custom_call.1} parent=27 // pred_check_branch
          %209 = sbr.rel (%p207) target = $region36
        $region35: #{tpu_custom_call.1} parent=27 // pred_region
          %210 = dma.done %s203, 256
        $region36: #{tpu_custom_call.1} parent=27 // pred_fallthru
          _
        %s211 = sand.u32 %s48, 1
        %s212 = scalar_lea.sflag [#allocation3], %s211
        %s213 = sand.u32 %s48, 1
        %s214 = smul.addr %s213, 16
        %s215 = scalar_lea.vmem [#allocation2], %s214
        %p216 = pneg %p61
        %p217 = pneg %p58
        %s218 = sand.u32 %s80, 1
        %s219 = scalar_lea.sflag [#allocation6], %s218
        %s220 = sand.u32 %s80, 1
        %s221 = smul.addr %s220, 16
        %s222 = scalar_lea.vmem [#allocation5], %s221
        %p223 = pneg %p93
        %p224 = pneg %p90
        %p225 = pneg %p119
        %p226 = pneg %p116
        %s227 = sand.u32 %s106, 1
        %s228 = scalar_lea.sflag [#allocation4], %s227
        %s229 = sand.u32 %s106, 1
        %s230 = scalar_lea.vmem [#allocation7], %s229
        %s231 = sadd.s32 %s26, %s27
        %p232 = scmp.lt.s32.totalorder %s231, 0
        %s233 = scalar_select %p232, %s231, 0
        %s234 = smul.u32 2, %s233
        %s235 = sadd.s32 %s26, %s27
        %p236 = scmp.lt.s32.totalorder %s235, 0
        %s237 = scalar_select %p236, %s235, 0
        %s238 = smul.u32 2, %s237
        %p239 = scmp.eq.s32.totalorder %s27, 0
        // Predicated region
        $region37: #{tpu_custom_call.1} parent=27 // pred_check
          %p240 = pneg %p239
        $region38: #{tpu_custom_call.1} parent=27 // pred_check_branch
          %242 = sbr.rel (%p240) target = $region40
        $region39: #{tpu_custom_call.1} parent=27 // pred_region
          %vm243 = vcmask 204800
          %244 = vst.msk [vmem:[%s230] sm:$0x1] %vm243, 0.0
        $region40: #{tpu_custom_call.1} parent=27 // pred_fallthru
          _
        %s245 = sadd.s32 %s26, %s27
        %s246 = smul.u32 %s245, 10
        %s247 = ssub.s32 10, %s246
        %v248 = vld [vmem:[%s197] sm:$0xff]
        %v249 = vld [vmem:[%s197 + $0x8] sm:$0x3]
        %v250 = vld [vmem:[%s206] sm:$0xff]
        %v251 = vld [vmem:[%s206 + $0x8] sm:$0x3]
        %p252 = scmp.ge.s32.totalorder %s247, 10
        // Predicated region
        $region41: #{tpu_custom_call.1} parent=27 // pred_check
          %p253 = pneg %p252
        $region42: #{tpu_custom_call.1} parent=27 // pred_check_branch
          %255 = sbr.rel (%p253) target = $region44
        $region43: #{tpu_custom_call.1} parent=27 // pred_region
          %v256 = vsub.f32 %v248, %v250
          %v257 = vsub.f32 %v249, %v251
          %v258 = vld [vmem:[%s230] sm:$0x1]
          %v259 = vmul.f32 %v256, %v256
          %v260 = vmul.f32 %v257, %v257
          %vm261 = vcmask 211968
          %v262 = vsel %vm261, %v259, 0.0
          %vm263 = vcmask 205824
          %v264 = vsel %vm263, %v260, 0.0
          %v265 = vadd.f32 %v262, %v264
          %v266 = vrot.slane %v265, 4
          %v267 = vadd.f32 %v265, %v266
          %v268 = vrot.slane %v267, 2
          %v269 = vadd.f32 %v267, %v268
          %v270 = vrot.slane %v269, 1
          %v271 = vadd.f32 %v269, %v270
          %v272 = vadd.f32 %v258, %v271
          %vm273 = vcmask 204800
          %274 = vst.msk [vmem:[%s230] sm:$0x1] %vm273, %v272
        $region44: #{tpu_custom_call.1} parent=27 // pred_fallthru
          _
        %p275 = scmp.lt.s32.totalorder %s247, 10
        // Predicated region
        $region45: #{tpu_custom_call.1} parent=27 // pred_check
          %p276 = pneg %p275
        $region46: #{tpu_custom_call.1} parent=27 // pred_check_branch
          %278 = sbr.rel (%p276) target = $region48
        $region47: #{tpu_custom_call.1} parent=27 // pred_region
          %v279 = vlaneseq
          %v280 = vshrl.u32 %v279, 7
          %v281 = vadd.s32 %v280, 8
          %v282 = vstv %s247
          %vm283 = vcmp.lt.s32.totalorder %v280, %v282
          %vm284 = vcmp.lt.s32.totalorder %v281, %v282
          %v285 = vsel %vm283, %v248, 0.0
          %v286 = vsel %vm284, %v249, 0.0
          %v287 = vsel %vm283, %v250, 0.0
          %v288 = vsel %vm284, %v251, 0.0
          %v289 = vsub.f32 %v285, %v287
          %v290 = vsub.f32 %v286, %v288
          %v291 = vld [vmem:[%s230] sm:$0x1]
          %v292 = vmul.f32 %v289, %v289
          %v293 = vmul.f32 %v290, %v290
          %vm294 = vcmask 211968
          %v295 = vsel %vm294, %v292, 0.0
          %vm296 = vcmask 205824
          %v297 = vsel %vm296, %v293, 0.0
          %v298 = vadd.f32 %v295, %v297
          %v299 = vrot.slane %v298, 4
          %v300 = vadd.f32 %v298, %v299
          %v301 = vrot.slane %v300, 2
          %v302 = vadd.f32 %v300, %v301
          %v303 = vrot.slane %v302, 1
          %v304 = vadd.f32 %v302, %v303
          %v305 = vadd.f32 %v291, %v304
          %vm306 = vcmask 204800
          %307 = vst.msk [vmem:[%s230] sm:$0x1] %vm306, %v305
        $region48: #{tpu_custom_call.1} parent=27 // pred_fallthru
          _
        %s308 = sand.u32 %s106, 1
        %s309 = scalar_lea.sflag [#allocation4], %s308
        %s310 = sand.u32 %s106, 1
        %s311 = scalar_lea.vmem [#allocation7], %s310
        // Predicated region
        $region49: #{tpu_custom_call.1} parent=27 // pred_check
          %p312 = pneg %p116
        $region50: #{tpu_custom_call.1} parent=27 // pred_check_branch
          %314 = sbr.rel (%p312) target = $region52
        $region51: #{tpu_custom_call.1} parent=27 // pred_region
          %s316 = ssub.s32 16, 16
          %317 = vsyncadd %s309, %s316
          %s318 = smul.addr %s26, 16
          %s319 = scalar_lea.hbm %s2, %s318
          %s321 = sshll.u32 %s311, 4
          %s322 = int_to_ptr.vmem [resolvable:$true] %s321
          %324 = dma.vmem_to_hbm [thread:$0]  %s322, 16, %s319, %s309
        $region52: #{tpu_custom_call.1} parent=27 // pred_fallthru
          _
      $region28: #{tpu_custom_call.1} parent=5 // pred_fallthru
        _
      %p325 = scmp.le.s32.totalorder 2, %s17
      // Predicated region
      $region53: #{tpu_custom_call.1} parent=5 // pred_check
        %p326 = pneg %p325
      $region54: #{tpu_custom_call.1} parent=5 // pred_check_branch
        %328 = sbr.rel (%p326) target = $region56
      $region55: #{tpu_custom_call.1} parent=5 // pred_region
        %s329 = ssub.s32 %s17, 2
        // Predicated region
        $region57: #{tpu_custom_call.1} parent=55 // pred_check
          %p330 = pneg %p122
        $region58: #{tpu_custom_call.1} parent=55 // pred_check_branch
          %332 = sbr.rel (%p330) target = $region60
        $region59: #{tpu_custom_call.1} parent=55 // pred_region
          %s333 = sand.u32 %s107, 1
          %s334 = scalar_lea.sflag [#allocation4], %s333
          %s335 = sand.u32 %s107, 1
          %s336 = scalar_lea.vmem [#allocation7], %s335
          %337 = dma.done %s334, 16
        $region60: #{tpu_custom_call.1} parent=55 // pred_fallthru
          _
      $region56: #{tpu_custom_call.1} parent=5 // pred_fallthru
        _
    $region6: #{tpu_custom_call.1} parent=1 // loop_footer
      %s21 = sadd.s32 1, %s17
    $region7: #{tpu_custom_call.1} parent=1 // loop_footer_branch
      %16 = sbr.rel target = $region3
    $region8: #{tpu_custom_call.1} parent=1 // loop_exit
      _
    %338 = vsyncpa [#allocation3], 1
    %s339 = scalar_lea.sflag [#allocation3], 1
    %340 = vsyncpa %s339, 1
    %341 = vsyncpa [#allocation6], 1
    %s342 = scalar_lea.sflag [#allocation6], 1
    %343 = vsyncpa %s342, 1
    %344 = vsyncpa [#allocation4], 1
    %s345 = scalar_lea.sflag [#allocation4], 1
    %346 = vsyncpa %s345, 1

</llo_original>
